<compile_context>
chip_gen: v5e
topology: v5e:2x2
jax: 0.10.0
libtpu: 0.0.40
codegen_flags: <defaults>
</compile_context>

<pallas_src>
import jax
import jax.numpy as jnp
from jax.experimental import pallas as pl
from jax.experimental.pallas import tpu as pltpu

VOCAB = 512  # nn.Embedding(512, input_dim)


def _kernel_nomask(x_ref, pe_ref, o_ref):
    # x_ref : (tS, tD)   input tile (batch dim squeezed)
    # pe_ref: (tS, tD)   emb_weight[1:S+1] tile for this (s, d)
    # o_ref : (tS, tD)
    o_ref[...] = (x_ref[...] + pe_ref[...]).astype(o_ref.dtype)


def _kernel_mask(mask_ref, x_ref, pe_ref, pad_ref, o_ref):
    # mask_ref: (tS, 1) int32 -- nonzero = keep position id, 0 = use pad row (pos 0)
    # x_ref   : (tS, tD)
    # pe_ref  : (tS, tD)      emb_weight[1:S+1] tile
    # pad_ref : (1, tD)       emb_weight[0] row
    # o_ref   : (tS, tD)
    keep = mask_ref[...] != 0                                   # (tS, 1)
    add = jnp.where(keep, pe_ref[...], pad_ref[...])            # (tS, tD)
    o_ref[...] = (x_ref[...] + add).astype(o_ref.dtype)


def _pick_tile(dim, target, align):
    """Largest multiple of `align` that divides `dim` and is <= target, else the full dim."""
    if dim <= target:
        return dim
    t = (target // align) * align
    while t >= align:
        if dim % t == 0:
            return t
        t -= align
    return dim


def positional_embedding(inputs, emb_weight, mask=None):
    """inputs: (B, S, D) float; emb_weight: (VOCAB, D); mask: optional (B, S) of {0,1}."""
    B, S, D = inputs.shape
    V, Dw = emb_weight.shape
    assert Dw == D, "embedding dim mismatch"
    if S + 1 > V:
        # nn.Embedding(512, D) would raise for positions >= 512; do not silently wrap.
        raise ValueError(f"sequence length {S} exceeds positional table size {V} - 1")

    tS = _pick_tile(S, 512, 8)     # sublane-aligned
    tD = _pick_tile(D, 512, 128)   # lane-dense when D >= 128
    out_dtype = jnp.promote_types(inputs.dtype, emb_weight.dtype)

    # Layout plumbing, not compute: positions are arange(1, S+1) so the gathered
    # table is exactly the contiguous slice emb_weight[1:S+1]; row 0 is the pad row.
    pe_table = jax.lax.slice_in_dim(emb_weight, 1, S + 1, axis=0)   # (S, D)

    grid = (B, S // tS, D // tD)   # D innermost -> contiguous output writeback
    x_spec = pl.BlockSpec((None, tS, tD), lambda b, s, d: (b, s, d))
    pe_spec = pl.BlockSpec((tS, tD), lambda b, s, d: (s, d))
    out_spec = pl.BlockSpec((None, tS, tD), lambda b, s, d: (b, s, d))
    cparams = pltpu.CompilerParams(
        dimension_semantics=("parallel", "parallel", "parallel"))

    if mask is None:
        return pl.pallas_call(
            _kernel_nomask,
            out_shape=jax.ShapeDtypeStruct((B, S, D), out_dtype),
            grid_spec=pltpu.PrefetchScalarGridSpec(
                num_scalar_prefetch=0,
                grid=grid,
                in_specs=[x_spec, pe_spec],
                out_specs=out_spec,
            ),
            compiler_params=cparams,
        )(inputs, pe_table)

    mask_i = mask.astype(jnp.int32).reshape(B, S, 1)
    pad_row = jax.lax.slice_in_dim(emb_weight, 0, 1, axis=0)        # (1, D)
    mask_spec = pl.BlockSpec((None, tS, 1), lambda b, s, d: (b, s, 0))
    pad_spec = pl.BlockSpec((1, tD), lambda b, s, d: (0, d))

    return pl.pallas_call(
        _kernel_mask,
        out_shape=jax.ShapeDtypeStruct((B, S, D), out_dtype),
        grid_spec=pltpu.PrefetchScalarGridSpec(
            num_scalar_prefetch=0,
            grid=grid,
            in_specs=[mask_spec, x_spec, pe_spec, pad_spec],
            out_specs=out_spec,
        ),
        compiler_params=cparams,
    )(mask_i, inputs, pe_table, pad_row)


if __name__ == "__main__":
    B, S, D = 2, 8, 32

    key = jax.random.PRNGKey(0)
    k_x, k_w, k_m = jax.random.split(key, 3)

    x = jax.random.normal(k_x, (B, S, D), dtype=jnp.float32)
    # deterministic synthetic init of nn.Embedding(512, D).weight
    emb_w = 0.02 * jax.random.normal(k_w, (VOCAB, D), dtype=jnp.float32)
    mask = (jax.random.uniform(k_m, (B, S)) > 0.3).astype(jnp.int32)

    # run kernel (with and without mask)
    out_nomask = jax.block_until_ready(positional_embedding(x, emb_w))
    out_mask = jax.block_until_ready(positional_embedding(x, emb_w, mask=mask))

    # pure-JAX reference
    pos_ref = jnp.arange(1, S + 1, dtype=jnp.int32)[None, :].repeat(B, axis=0)
    ref_nomask = x + emb_w[pos_ref]
    ref_mask = x + emb_w[pos_ref * mask]

    assert jnp.allclose(out_nomask, ref_nomask, atol=1e-5)
    assert jnp.allclose(out_mask, ref_mask, atol=1e-5)

    print("KERNEL_OK")
</pallas_src>

<mosaic_0001>
module attributes {stable_mosaic.version = 11 : i64} {
  func.func @_kernel_nomask(%arg0: i32, %arg1: i32, %arg2: i32, %arg3: memref<1x8x32xf32, #tpu.memory_space<vmem>>, %arg4: memref<8x32xf32, #tpu.memory_space<vmem>>, %arg5: memref<1x8x32xf32, #tpu.memory_space<vmem>>) attributes {dimension_semantics = [#tpu.dimension_semantics<parallel>, #tpu.dimension_semantics<parallel>, #tpu.dimension_semantics<parallel>], iteration_bounds = array<i64: 2, 1, 1>, scalar_prefetch = 0 : i64, scratch_operands = 0 : i64, tpu.core_type = #tpu.core_type<tc>, window_params = [{transform_indices = @transform_0, window_bounds = array<i64: 1, 8, 32>}, {transform_indices = @transform_1, window_bounds = array<i64: 8, 32>}, {transform_indices = @transform_2, window_bounds = array<i64: 1, 8, 32>}]} {
    %c0 = arith.constant 0 : index
    %c0_0 = arith.constant 0 : index
    %c0_1 = arith.constant 0 : index
    %0 = vector.load %arg3[%c0, %c0_0, %c0_1] : memref<1x8x32xf32, #tpu.memory_space<vmem>>, vector<1x8x32xf32>
    %1 = vector.shape_cast %0 : vector<1x8x32xf32> to vector<8x32xf32>
    %c0_2 = arith.constant 0 : index
    %c0_3 = arith.constant 0 : index
    %2 = vector.load %arg4[%c0_2, %c0_3] : memref<8x32xf32, #tpu.memory_space<vmem>>, vector<8x32xf32>
    %3 = arith.addf %1, %2 : vector<8x32xf32>
    %c0_4 = arith.constant 0 : index
    %c0_5 = arith.constant 0 : index
    %c0_6 = arith.constant 0 : index
    %4 = vector.load %arg5[%c0_4, %c0_5, %c0_6] : memref<1x8x32xf32, #tpu.memory_space<vmem>>, vector<1x8x32xf32>
    %5 = vector.shape_cast %4 : vector<1x8x32xf32> to vector<8x32xf32>
    %6 = vector.shape_cast %3 : vector<8x32xf32> to vector<1x8x32xf32>
    tpu.vector_store %arg5[%c0_4, %c0_5, %c0_6], %6 {strides = array<i32>} : memref<1x8x32xf32, #tpu.memory_space<vmem>>, vector<1x8x32xf32>,
    return
  }
  func.func @transform_0(%arg0: i32, %arg1: i32, %arg2: i32) -> (i32, i32, i32) {
    %c0_i32 = arith.constant 0 : i32
    return %arg0, %arg1, %arg2 : i32, i32, i32
  }
  func.func @transform_1(%arg0: i32, %arg1: i32, %arg2: i32) -> (i32, i32) {
    %c0_i32 = arith.constant 0 : i32
    return %arg1, %arg2 : i32, i32
  }
  func.func @transform_2(%arg0: i32, %arg1: i32, %arg2: i32) -> (i32, i32, i32) {
    %c0_i32 = arith.constant 0 : i32
    return %arg0, %arg1, %arg2 : i32, i32, i32
  }
}

</mosaic_0001>

<llo_original>
// kernel: tpu_custom_call.1
$region0: #{tpu_custom_call.1}
  #allocation0 [shape = 'u32[]', space=smem, size = 0x4, offset = 0x4, fixed_abs, tag = 'smem constant byte address 0x4 - core index']
  #allocation1 [shape = 'u32[72,128]{1,0:T(1,128)}', space=vmem, size = 0x9000, scoped, tag = 'internal scratch']
  %s0 = inlined_call_operand.hbm [shape: f32[2,8,32], index: 0, kind: input, shape index: {}]
  %s1 = inlined_call_operand.hbm [shape: f32[8,32], index: 1, kind: input, shape index: {}]
  %s2 = inlined_call_operand.hbm [shape: f32[2,8,32], index: 2, kind: output, shape index: {}]
  %s3 = sld [smem:[#allocation0]]
  $region49: #{tpu_custom_call.1} parent=0
    _
  %s5 = ssub.s32 1, %s3
  %s6 = scalar_select 0, %s5, %s3
  $region1: #{tpu_custom_call.1} parent=0
    #allocation2 [shape = 'u8[8192]{0}', space=vmem, size = 0x2000, scoped, tag = 'input window, operand 0']
    #allocation3 [shape = 's32[2]{0}', space=sflag, size = 0x8, scoped, tag = 'scoped memory for tpu_custom_call.1']
    #allocation4 [shape = 's32[2]{0}', space=sflag, size = 0x8, scoped, tag = 'scoped memory for tpu_custom_call.1']
    #allocation5 [shape = 'u8[4096]{0}', space=vmem, size = 0x1000, scoped, tag = 'input window, operand 1, single buffered']
    #allocation6 [shape = 's32[1]{0}', space=sflag, size = 0x4, scoped, tag = 'scoped memory for tpu_custom_call.1']
    #allocation7 [shape = 'u8[8192]{0}', space=vmem, size = 0x2000, scoped, tag = 'output window, operand 0']
    %7 = vsyncpa [#allocation3], 0
    %s8 = scalar_lea.sflag [#allocation3], 1
    %9 = vsyncpa %s8, 0
    %10 = vsyncpa [#allocation6], 0
    %11 = vsyncpa [#allocation4], 0
    %s12 = scalar_lea.sflag [#allocation4], 1
    %13 = vsyncpa %s12, 0
    loop: start=0, step=1, limit=4
    $region2: #{tpu_custom_call.1} parent=1 // loop_pre_header
      _
    $region3: #{tpu_custom_call.1} parent=1 // loop_header
      %s15 = sphi 0, %s19
      %p16 = scmp.ge.s32.totalorder %s15, 4
      %s22 = sphi 0, %s41
      %s23 = sphi 0, %s37
      %s24 = sphi 0, %s33
      %s25 = sphi 0, %s22
      %s26 = sphi 0, %s23
      %s27 = sphi 0, %s24
      %s28 = sphi 0, %s25
      %s29 = sphi 0, %s26
      %s30 = sphi 0, %s27
      %s48 = sphi 0, %s50
      %s51 = sphi 0, %s48
      %s52 = sphi 0, %s51
      %s68 = sphi 0, %s52
      %s76 = sphi 0, %s78
      %s79 = sphi 0, %s76
      %s80 = sphi 0, %s79
      %s96 = sphi 0, %s80
      %s106 = sphi 0, %s108
      %s109 = sphi 0, %s106
      %s110 = sphi 0, %s109
      %s126 = sphi 0, %s110
    $region4: #{tpu_custom_call.1} parent=1 // loop_header_branch
      %18 = sbr.rel (%p16) target = $region8
    $region5: #{tpu_custom_call.1} parent=1 // loop_body
      %s20 = ssub.s32 %s15, 1
      %s21 = ssub.s32 %s15, 2
      %s31 = sadd.s32 1, %s24
      %p32 = scmp.ge.s32.totalorder %s31, 1
      %s33 = scalar_select %p32, 0, %s31
      %s34 = sadd.s32 1, %s23
      %s35 = scalar_select %p32, %s34, %s23
      %p36 = scmp.ge.s32.totalorder %s35, 1
      %s37 = scalar_select %p36, 0, %s35
      %s38 = sadd.s32 1, %s22
      %s39 = scalar_select %p36, %s38, %s22
      %p40 = scmp.ge.s32.totalorder %s39, 2
      %s41 = scalar_select %p40, 0, %s39
      %s42 = ssub.s32 %s22, %s41
      %s43 = ssub.s32 %s23, %s37
      %s44 = sor.u32 %s42, %s43
      %s45 = ssub.s32 %s24, %s33
      %s46 = sor.u32 %s44, %s45
      %p47 = scmp.eq.s32.totalorder %s46, 0
      %s49 = sadd.s32 %s48, 1
      %s50 = scalar_select %p47, %s48, %s49
      %p53 = pneg %p47
      %p54 = scmp.eq.s32.totalorder %s15, 1
      %p55 = por %p53, %p54
      %p56 = scmp.ne.s32.totalorder %s48, %s51
      %p57 = scmp.eq.s32.totalorder %s15, 0
      %p58 = por %p56, %p57
      %p59 = scmp.ne.s32.totalorder %s48, %s51
      %p60 = scmp.eq.s32.totalorder %s20, 1
      %p61 = por %p59, %p60
      %p62 = scmp.ne.s32.totalorder %s51, %s52
      %p63 = scmp.eq.s32.totalorder %s20, 0
      %p64 = por %p62, %p63
      %p65 = scmp.ne.s32.totalorder %s51, %s52
      %p66 = scmp.eq.s32.totalorder %s21, 1
      %p67 = por %p65, %p66
      %p69 = scmp.ne.s32.totalorder %s52, %s68
      %p70 = scmp.eq.s32.totalorder %s21, 0
      %p71 = por %p69, %p70
      %s72 = ssub.s32 %s23, %s37
      %s73 = ssub.s32 %s24, %s33
      %s74 = sor.u32 %s72, %s73
      %p75 = scmp.eq.s32.totalorder %s74, 0
      %s77 = sadd.s32 %s76, 1
      %s78 = scalar_select %p75, %s76, %s77
      %p81 = pneg %p75
      %p82 = scmp.eq.s32.totalorder %s15, 1
      %p83 = por %p81, %p82
      %p84 = scmp.ne.s32.totalorder %s76, %s79
      %p85 = scmp.eq.s32.totalorder %s15, 0
      %p86 = por %p84, %p85
      %p87 = scmp.ne.s32.totalorder %s76, %s79
      %p88 = scmp.eq.s32.totalorder %s20, 1
      %p89 = por %p87, %p88
      %p90 = scmp.ne.s32.totalorder %s79, %s80
      %p91 = scmp.eq.s32.totalorder %s20, 0
      %p92 = por %p90, %p91
      %p93 = scmp.ne.s32.totalorder %s79, %s80
      %p94 = scmp.eq.s32.totalorder %s21, 1
      %p95 = por %p93, %p94
      %p97 = scmp.ne.s32.totalorder %s80, %s96
      %p98 = scmp.eq.s32.totalorder %s21, 0
      %p99 = por %p97, %p98
      %s100 = ssub.s32 %s22, %s41
      %s101 = ssub.s32 %s23, %s37
      %s102 = sor.u32 %s100, %s101
      %s103 = ssub.s32 %s24, %s33
      %s104 = sor.u32 %s102, %s103
      %p105 = scmp.eq.s32.totalorder %s104, 0
      %s107 = sadd.s32 %s106, 1
      %s108 = scalar_select %p105, %s106, %s107
      %p111 = pneg %p105
      %p112 = scmp.eq.s32.totalorder %s15, 1
      %p113 = por %p111, %p112
      %p114 = scmp.ne.s32.totalorder %s106, %s109
      %p115 = scmp.eq.s32.totalorder %s15, 0
      %p116 = por %p114, %p115
      %p117 = scmp.ne.s32.totalorder %s106, %s109
      %p118 = scmp.eq.s32.totalorder %s20, 1
      %p119 = por %p117, %p118
      %p120 = scmp.ne.s32.totalorder %s109, %s110
      %p121 = scmp.eq.s32.totalorder %s20, 0
      %p122 = por %p120, %p121
      %p123 = scmp.ne.s32.totalorder %s109, %s110
      %p124 = scmp.eq.s32.totalorder %s21, 1
      %p125 = por %p123, %p124
      %p127 = scmp.ne.s32.totalorder %s110, %s126
      %p128 = scmp.eq.s32.totalorder %s21, 0
      %p129 = por %p127, %p128
      %p130 = scmp.le.s32.totalorder 1, %s15
      %p131 = scmp.lt.s32.totalorder %s15, 3
      %p132 = pnand %p130, %p131
      %p133 = pneg %p132
      // Predicated region
      $region9: #{tpu_custom_call.1} parent=5 // pred_check
        _
      $region10: #{tpu_custom_call.1} parent=5 // pred_check_branch
        %135 = sbr.rel (%p132) target = $region12
      $region11: #{tpu_custom_call.1} parent=5 // pred_region
        %s136 = ssub.s32 %s15, 1
        // Predicated region
        $region13: #{tpu_custom_call.1} parent=11 // pred_check
          %p137 = pneg %p92
        $region14: #{tpu_custom_call.1} parent=11 // pred_check_branch
          %139 = sbr.rel (%p137) target = $region16
        $region15: #{tpu_custom_call.1} parent=11 // pred_region
          %141 = vsyncadd [#allocation6], 0
          %s142 = sadd.s32 %s27, %s26
          %s143 = smul.addr %s142, 8
          %s144 = scalar_lea.hbm %s1, %s143
          %s146 = sshll.u32 %s144, 4
          %s147 = int_to_ptr.hbm [resolvable:$true] %s146
          %s148 = sshll.u32 [#allocation5], 4
          %s149 = int_to_ptr.vmem [resolvable:$true] %s148
          %151 = dma.hbm_to_vmem [thread:$0]  %s147, 128, %s149, [#allocation6]
        $region16: #{tpu_custom_call.1} parent=11 // pred_fallthru
          _
      $region12: #{tpu_custom_call.1} parent=5 // pred_fallthru
        _
      %p152 = scmp.lt.s32.totalorder %s15, 2
      // Predicated region
      $region17: #{tpu_custom_call.1} parent=5 // pred_check
        %p153 = pneg %p152
      $region18: #{tpu_custom_call.1} parent=5 // pred_check_branch
        %155 = sbr.rel (%p153) target = $region20
      $region19: #{tpu_custom_call.1} parent=5 // pred_region
        // Predicated region
        $region21: #{tpu_custom_call.1} parent=19 // pred_check
          %p156 = pneg %p58
        $region22: #{tpu_custom_call.1} parent=19 // pred_check_branch
          %158 = sbr.rel (%p156) target = $region24
        $region23: #{tpu_custom_call.1} parent=19 // pred_region
          %s159 = sand.u32 %s48, 1
          %s160 = scalar_lea.sflag [#allocation3], %s159
          %s161 = sand.u32 %s48, 1
          %s162 = smul.addr %s161, 8
          %s163 = scalar_lea.vmem [#allocation2], %s162
          %165 = vsyncadd %s160, 0
          %s166 = sadd.s32 %s24, %s23
          %s167 = sadd.s32 %s166, %s22
          %s168 = smul.addr %s167, 8
          %s169 = scalar_lea.hbm %s0, %s168
          %s171 = sshll.u32 %s169, 4
          %s172 = int_to_ptr.hbm [resolvable:$true] %s171
          %s173 = sshll.u32 %s163, 4
          %s174 = int_to_ptr.vmem [resolvable:$true] %s173
          %176 = dma.hbm_to_vmem [thread:$0]  %s172, 128, %s174, %s160
        $region24: #{tpu_custom_call.1} parent=19 // pred_fallthru
          _
      $region20: #{tpu_custom_call.1} parent=5 // pred_fallthru
        _
      %p177 = scmp.le.s32.totalorder 1, %s15
      %p178 = scmp.lt.s32.totalorder %s15, 3
      %p179 = pnand %p177, %p178
      %p180 = pneg %p179
      // Predicated region
      $region25: #{tpu_custom_call.1} parent=5 // pred_check
        _
      $region26: #{tpu_custom_call.1} parent=5 // pred_check_branch
        %182 = sbr.rel (%p179) target = $region28
      $region27: #{tpu_custom_call.1} parent=5 // pred_region
        %s183 = ssub.s32 %s15, 1
        %s184 = sand.u32 %s51, 1
        %s185 = scalar_lea.sflag [#allocation3], %s184
        %s186 = sand.u32 %s51, 1
        %s187 = smul.addr %s186, 8
        %s188 = scalar_lea.vmem [#allocation2], %s187
        // Predicated region
        $region29: #{tpu_custom_call.1} parent=27 // pred_check
          %p189 = pneg %p64
        $region30: #{tpu_custom_call.1} parent=27 // pred_check_branch
          %191 = sbr.rel (%p189) target = $region32
        $region31: #{tpu_custom_call.1} parent=27 // pred_region
          %193 = dma.done %s185, 128
        $region32: #{tpu_custom_call.1} parent=27 // pred_fallthru
          _
        // Predicated region
        $region33: #{tpu_custom_call.1} parent=27 // pred_check
          %p194 = pneg %p92
        $region34: #{tpu_custom_call.1} parent=27 // pred_check_branch
          %196 = sbr.rel (%p194) target = $region36
        $region35: #{tpu_custom_call.1} parent=27 // pred_region
          %198 = dma.done [#allocation6], 128
        $region36: #{tpu_custom_call.1} parent=27 // pred_fallthru
          _
        %s199 = sand.u32 %s51, 1
        %s200 = scalar_lea.sflag [#allocation3], %s199
        %s201 = sand.u32 %s51, 1
        %s202 = smul.addr %s201, 8
        %s203 = scalar_lea.vmem [#allocation2], %s202
        %p204 = pneg %p64
        %p205 = pneg %p61
        %p206 = pneg %p92
        %p207 = pneg %p89
        %p208 = pneg %p122
        %p209 = pneg %p119
        %s210 = sand.u32 %s109, 1
        %s211 = scalar_lea.sflag [#allocation4], %s210
        %s212 = sand.u32 %s109, 1
        %s213 = smul.addr %s212, 8
        %s214 = scalar_lea.vmem [#allocation7], %s213
        %v215 = vld [vmem:[%s188] sm:$0xff]
        %v216 = vld [vmem:[#allocation5] sm:$0xff]
        %v217 = vadd.f32 %v215, %v216
        %vm218 = vcmask 261120
        %219 = vst.msk [vmem:[%s214] sm:$0xff] %vm218, %v217
        %s220 = sand.u32 %s109, 1
        %s221 = scalar_lea.sflag [#allocation4], %s220
        %s222 = sand.u32 %s109, 1
        %s223 = smul.addr %s222, 8
        %s224 = scalar_lea.vmem [#allocation7], %s223
        // Predicated region
        $region37: #{tpu_custom_call.1} parent=27 // pred_check
          %p225 = pneg %p119
        $region38: #{tpu_custom_call.1} parent=27 // pred_check_branch
          %227 = sbr.rel (%p225) target = $region40
        $region39: #{tpu_custom_call.1} parent=27 // pred_region
          %229 = vsyncadd %s221, 0
          %s230 = sadd.s32 %s27, %s26
          %s231 = sadd.s32 %s230, %s25
          %s232 = smul.addr %s231, 8
          %s233 = scalar_lea.hbm %s2, %s232
          %s235 = sshll.u32 %s224, 4
          %s236 = int_to_ptr.vmem [resolvable:$true] %s235
          %s237 = sshll.u32 %s233, 4
          %s238 = int_to_ptr.hbm [resolvable:$true] %s237
          %240 = dma.vmem_to_hbm [thread:$0]  %s236, 128, %s238, %s221
        $region40: #{tpu_custom_call.1} parent=27 // pred_fallthru
          _
      $region28: #{tpu_custom_call.1} parent=5 // pred_fallthru
        _
      %p241 = scmp.le.s32.totalorder 2, %s15
      // Predicated region
      $region41: #{tpu_custom_call.1} parent=5 // pred_check
        %p242 = pneg %p241
      $region42: #{tpu_custom_call.1} parent=5 // pred_check_branch
        %244 = sbr.rel (%p242) target = $region44
      $region43: #{tpu_custom_call.1} parent=5 // pred_region
        %s245 = ssub.s32 %s15, 2
        // Predicated region
        $region45: #{tpu_custom_call.1} parent=43 // pred_check
          %p246 = pneg %p125
        $region46: #{tpu_custom_call.1} parent=43 // pred_check_branch
          %248 = sbr.rel (%p246) target = $region48
        $region47: #{tpu_custom_call.1} parent=43 // pred_region
          %s249 = sand.u32 %s110, 1
          %s250 = scalar_lea.sflag [#allocation4], %s249
          %s251 = sand.u32 %s110, 1
          %s252 = smul.addr %s251, 8
          %s253 = scalar_lea.vmem [#allocation7], %s252
          %255 = dma.done %s250, 128
        $region48: #{tpu_custom_call.1} parent=43 // pred_fallthru
          _
      $region44: #{tpu_custom_call.1} parent=5 // pred_fallthru
        _
    $region6: #{tpu_custom_call.1} parent=1 // loop_footer
      %s19 = sadd.s32 1, %s15
    $region7: #{tpu_custom_call.1} parent=1 // loop_footer_branch
      %14 = sbr.rel target = $region3
    $region8: #{tpu_custom_call.1} parent=1 // loop_exit
      _
    %256 = vsyncpa [#allocation3], 1
    %s257 = scalar_lea.sflag [#allocation3], 1
    %258 = vsyncpa %s257, 1
    %259 = vsyncpa [#allocation6], 1
    %260 = vsyncpa [#allocation4], 1
    %s261 = scalar_lea.sflag [#allocation4], 1
    %262 = vsyncpa %s261, 1

</llo_original>
